<compile_context>
chip_gen: v5e
topology: v5e:2x2
jax: 0.10.0
libtpu: 0.0.40
codegen_flags: <defaults>
</compile_context>

<pallas_src>
import functools

import jax
import jax.numpy as jnp
from jax.experimental import pallas as pl
from jax.experimental.pallas import tpu as pltpu

_LANE = 128            # TPU lane width; last block dim must be a multiple.
_MAX_TILE_B = 64 * 1024  # 8 MiB double-buffered VMEM incl. 8-sublane padding
                         # -> safe on v5e (16 MiB scoped), v6e, v7x (64 MiB).


def linear_kernel(x_ref, w_ref, b_ref, o_ref):
    # x_ref: VMEM (K, TILE_B)   w_ref: SMEM (K,)   b_ref: SMEM (1,)
    # o_ref: VMEM (1, TILE_B)
    k_feats = x_ref.shape[0]
    # Unrolled VPU multiply-add over the K=3 features (no MXU).
    acc = x_ref[0:1, :] * w_ref[0]
    for k in range(1, k_feats):
        acc = acc + x_ref[k:k + 1, :] * w_ref[k]
    o_ref[...] = (acc + b_ref[0]).astype(o_ref.dtype)


def _pick_tile_b(batch):
    """Pick a lane-multiple batch tile: >=1-2 MiB HBM per grid step, even
    number of tiles (v7x 2-TC sharding), padding limited to a few lanes."""
    b_lanes = pl.cdiv(batch, _LANE) * _LANE
    if b_lanes <= 2 * _LANE:
        return _LANE
    n_tiles = max(2, pl.cdiv(b_lanes, _MAX_TILE_B))
    if n_tiles % 2:
        n_tiles += 1          # even split keeps both v7x TensorCores busy
    tile_b = pl.cdiv(pl.cdiv(b_lanes, n_tiles), _LANE) * _LANE
    return max(_LANE, tile_b)


@functools.partial(jax.jit, static_argnames=("tile_b",))
def linear_forward(x, weight, bias, *, tile_b=None):
    """x: (B, 3) f32, weight: (1, 3) f32 (PyTorch layout), bias: (1,) f32.
    Returns (B, 1), identical to nn.Linear(3, 1)(x)."""
    B, in_f = x.shape
    out_f = weight.shape[0]

    if tile_b is None:
        tile_b = _pick_tile_b(B)
    tile_b = max(_LANE, (int(tile_b) // _LANE) * _LANE)
    b_pad = pl.cdiv(B, tile_b) * tile_b
    grid_b = b_pad // tile_b

    # Lane-dense (features-major) layout: single pad of x.T, no zeros+scatter.
    x_t = x.T
    if b_pad != B:
        x_t = jnp.pad(x_t, ((0, 0), (0, b_pad - B)))

    w_vec = weight.reshape(in_f).astype(jnp.float32)   # (3,)  -> SMEM
    b_vec = bias.reshape(out_f).astype(jnp.float32)    # (1,)  -> SMEM

    # VMEM budget: (3,tile) and (1,tile) blocks each pad to 8 sublanes,
    # double-buffered -> 2 * 2 * (8 * tile_b * 4) bytes, plus headroom.
    block_bytes = 8 * tile_b * 4
    vmem_limit = int(2 * 2 * block_bytes + (2 << 20))

    cost = pl.CostEstimate(
        flops=7 * B * out_f,                  # 3 mul + 3 add + bias per row
        transcendentals=0,
        bytes_accessed=(in_f + out_f) * 4 * B)

    out_t = pl.pallas_call(
        linear_kernel,
        out_shape=jax.ShapeDtypeStruct((out_f, b_pad), x.dtype),
        grid=(grid_b,),
        in_specs=[
            pl.BlockSpec((in_f, tile_b), lambda i: (0, i)),       # x tile
            pl.BlockSpec(memory_space=pltpu.MemorySpace.SMEM),    # weight
            pl.BlockSpec(memory_space=pltpu.MemorySpace.SMEM),    # bias
        ],
        out_specs=pl.BlockSpec((out_f, tile_b), lambda i: (0, i)),
        compiler_params=pltpu.CompilerParams(
            dimension_semantics=("parallel",),
            vmem_limit_bytes=vmem_limit,
            allow_input_fusion=[True, False, False]),
        cost_estimate=cost,
    )(x_t, w_vec, b_vec)

    # Back to the PyTorch (B, 1) layout, dropping batch padding.
    return out_t[:, :B].T


if __name__ == "__main__":
    key = jax.random.PRNGKey(0)
    kx, kw, kb, kx2 = jax.random.split(key, 4)

    # Shapes consistent with nn.Linear(3, 1): batch of 8 rows, 3 features.
    B, in_features, out_features = 8, 3, 1
    x = jax.random.normal(kx, (B, in_features), dtype=jnp.float32)

    # Deterministic init mimicking nn.Linear's uniform(-1/sqrt(3), 1/sqrt(3)).
    bound = 1.0 / jnp.sqrt(jnp.float32(in_features))
    weight = jax.random.uniform(kw, (out_features, in_features),
                                minval=-bound, maxval=bound, dtype=jnp.float32)
    bias = jax.random.uniform(kb, (out_features,),
                              minval=-bound, maxval=bound, dtype=jnp.float32)

    out = linear_forward(x, weight, bias)
    jax.block_until_ready(out)
    ref = x @ weight.T + bias
    assert out.shape == (B, out_features)
    assert jnp.allclose(out, ref, atol=1e-5, rtol=1e-5)

    # Second check: non-lane-aligned batch with auto tile selection
    # (grid of 2 even tiles, ragged tail padded to the lane width).
    B2 = 300
    x2 = jax.random.normal(kx2, (B2, in_features), dtype=jnp.float32)
    out2 = linear_forward(x2, weight, bias)
    jax.block_until_ready(out2)
    ref2 = x2 @ weight.T + bias
    assert out2.shape == (B2, out_features)
    assert jnp.allclose(out2, ref2, atol=1e-5, rtol=1e-5)

    # Third check: explicit small tile to exercise a multi-step grid (grid=(3,)).
    out3 = linear_forward(x2, weight, bias, tile_b=128)
    jax.block_until_ready(out3)
    assert jnp.allclose(out3, ref2, atol=1e-5, rtol=1e-5)

    print("KERNEL_OK")
</pallas_src>

<mosaic_0001>
module attributes {stable_mosaic.version = 11 : i64} {
  func.func @linear_kernel(%arg0: i32, %arg1: memref<3x128xf32, #tpu.memory_space<vmem>>, %arg2: memref<3xf32, #tpu.memory_space<smem>>, %arg3: memref<1xf32, #tpu.memory_space<smem>>, %arg4: memref<1x128xf32, #tpu.memory_space<vmem>>) attributes {dimension_semantics = [#tpu.dimension_semantics<parallel>], iteration_bounds = array<i64: 1>, scalar_prefetch = 0 : i64, scratch_operands = 0 : i64, tpu.core_type = #tpu.core_type<tc>, window_params = [{transform_indices = @transform_0, window_bounds = array<i64: 3, 128>}, {transform_indices = @transform_1, window_bounds = array<i64: 3>}, {transform_indices = @transform_2, window_bounds = array<i64: 1>}, {transform_indices = @transform_3, window_bounds = array<i64: 1, 128>}]} {
    %c0 = arith.constant 0 : index
    %c0_0 = arith.constant 0 : index
    %0 = vector.load %arg1[%c0, %c0_0] : memref<3x128xf32, #tpu.memory_space<vmem>>, vector<1x128xf32>
    %c0_1 = arith.constant 0 : index
    %1 = memref.load %arg2[%c0_1] : memref<3xf32, #tpu.memory_space<smem>>
    %2 = vector.broadcast %1 : f32 to vector<1x128xf32>
    %3 = arith.mulf %0, %2 : vector<1x128xf32>
    %c1 = arith.constant 1 : index
    %c0_2 = arith.constant 0 : index
    %4 = vector.load %arg1[%c1, %c0_2] : memref<3x128xf32, #tpu.memory_space<vmem>>, vector<1x128xf32>
    %c1_3 = arith.constant 1 : index
    %5 = memref.load %arg2[%c1_3] : memref<3xf32, #tpu.memory_space<smem>>
    %6 = vector.broadcast %5 : f32 to vector<1x128xf32>
    %7 = arith.mulf %4, %6 : vector<1x128xf32>
    %8 = arith.addf %3, %7 : vector<1x128xf32>
    %c2 = arith.constant 2 : index
    %c0_4 = arith.constant 0 : index
    %9 = vector.load %arg1[%c2, %c0_4] : memref<3x128xf32, #tpu.memory_space<vmem>>, vector<1x128xf32>
    %c2_5 = arith.constant 2 : index
    %10 = memref.load %arg2[%c2_5] : memref<3xf32, #tpu.memory_space<smem>>
    %11 = vector.broadcast %10 : f32 to vector<1x128xf32>
    %12 = arith.mulf %9, %11 : vector<1x128xf32>
    %13 = arith.addf %8, %12 : vector<1x128xf32>
    %c0_6 = arith.constant 0 : index
    %14 = memref.load %arg3[%c0_6] : memref<1xf32, #tpu.memory_space<smem>>
    %15 = vector.broadcast %14 : f32 to vector<1x128xf32>
    %16 = arith.addf %13, %15 : vector<1x128xf32>
    %c0_7 = arith.constant 0 : index
    %c0_8 = arith.constant 0 : index
    %17 = vector.load %arg4[%c0_7, %c0_8] : memref<1x128xf32, #tpu.memory_space<vmem>>, vector<1x128xf32>
    tpu.vector_store %arg4[%c0_7, %c0_8], %16 {strides = array<i32>} : memref<1x128xf32, #tpu.memory_space<vmem>>, vector<1x128xf32>,
    return
  }
  func.func @transform_0(%arg0: i32) -> (i32, i32) {
    %c0_i32 = arith.constant 0 : i32
    %c0_i32_0 = arith.constant 0 : i32
    return %c0_i32, %arg0 : i32, i32
  }
  func.func @transform_1(%arg0: i32) -> i32 {
    %c0_i32 = arith.constant 0 : i32
    %c0_i32_0 = arith.constant 0 : i32
    return %c0_i32 : i32
  }
  func.func @transform_2(%arg0: i32) -> i32 {
    %c0_i32 = arith.constant 0 : i32
    %c0_i32_0 = arith.constant 0 : i32
    return %c0_i32 : i32
  }
  func.func @transform_3(%arg0: i32) -> (i32, i32) {
    %c0_i32 = arith.constant 0 : i32
    %c0_i32_0 = arith.constant 0 : i32
    return %c0_i32, %arg0 : i32, i32
  }
}

</mosaic_0001>

<llo_original>
// kernel: linear_forward.2
$region0: #{linear_forward.2}
  #allocation0 [shape = 'u32[]', space=smem, size = 0x4, offset = 0x4, fixed_abs, tag = 'smem constant byte address 0x4 - core index']
  #allocation1 [shape = 'u32[72,128]{1,0:T(1,128)}', space=vmem, size = 0x9000, scoped, tag = 'internal scratch']
  #allocation2 [shape = 'u32[2048]{0}', space=vmem, size = 0x2000, scoped, tag = 'scoped memory for linear_forward.2']
  #allocation3 [shape = 'u32[2048]{0}', space=vmem, size = 0x2000, scoped, tag = 'scoped memory for linear_forward.2']
  #allocation4 [shape = 'u32[2048]{0}', space=vmem, size = 0x2000, scoped, tag = 'scoped memory for linear_forward.2']
  #allocation5 [shape = 'u32[2048]{0}', space=vmem, size = 0x2000, scoped, tag = 'scoped memory for linear_forward.2']
  #allocation6 [shape = 'u32[2048]{0}', space=vmem, size = 0x2000, scoped, tag = 'scoped memory for linear_forward.2']
  #allocation7 [shape = 'f32[1]{0:T(128)S(6)}', space=smem, size = 0x200, scoped, tag = 'scoped memory for linear_forward.2']
  %s0 = inlined_call_operand.vmem [shape: f32[3], index: 0, kind: input, shape index: {}]
  %s1 = inlined_call_operand.<no memory space> [shape: f32[1], index: 1, kind: input, shape index: {}]
  %s2 = inlined_call_operand.hbm [shape: f32[3,8], index: 2, kind: input, shape index: {}]
  %s3 = inlined_call_operand.<no memory space> [shape: f32[], index: 3, kind: input, shape index: {}]
  %s4 = inlined_call_operand.vmem [shape: f32[1,128], index: 4, kind: output, shape index: {}]
  %s5 = sld [smem:[#allocation0]]
  $region30: #{linear_forward.2} parent=0
    _
  %s7 = ssub.s32 1, %s5
  %s8 = scalar_select 0, %s7, %s5
  %v9 = vstv %s3
  %10 = sst [smem:[#allocation7]] %s1
  $region1: #{linear_forward.2} parent=0
    #allocation8 [shape = 'u8[2048]{0}', space=vmem, size = 0x800, scoped, tag = 'operand span for operand 2']
    #allocation9 [shape = 's32[1]{0}', space=sflag, size = 0x4, scoped, tag = 'scoped memory for linear_forward.2']
    #allocation10 [shape = 's32[1]{0}', space=sflag, size = 0x4, scoped, tag = 'scoped memory for linear_forward.2']
    #allocation11 [shape = 'u8[512]{0}', space=smem, size = 0x200, scoped, tag = 'input window, operand 1, single buffered']
    #allocation12 [shape = 'u8[2048]{0}', space=vmem, size = 0x800, dematerialized = true, scoped, tag = 'FusionAdapter Buffer %fusion.1 = f32[3,128]{1,0:T(4,128)} fusion(%param_2.1, %param_3), kind=kLoop, calls=%fused_computation.1.clone, metadata={op_name="jit(linear_forward)/jit(_pad)/pad" stack_frame_id=8}']
    %11 = vsyncpa [#allocation9], 0
    %12 = vsyncpa [#allocation10], 0
    // Predicated region
    $region2: #{linear_forward.2} parent=1 // pred_check
      _
    $region3: #{linear_forward.2} parent=1 // pred_check_branch
      %14 = sbr.rel (0) target = $region5
    $region4: #{linear_forward.2} parent=1 // pred_region
      %16 = vsyncadd [#allocation9], 0
      %s18 = sshll.u32 %s2, 4
      %s19 = int_to_ptr.hbm [resolvable:$true] %s18
      %s20 = sshll.u32 [#allocation8], 4
      %s21 = int_to_ptr.vmem [resolvable:$true] %s20
      %23 = dma.hbm_to_vmem [thread:$0]  %s19, 64, %s21, [#allocation9]
    $region5: #{linear_forward.2} parent=1 // pred_fallthru
      _
    // Predicated region
    $region6: #{linear_forward.2} parent=1 // pred_check
      _
    $region7: #{linear_forward.2} parent=1 // pred_check_branch
      %25 = sbr.rel (0) target = $region9
    $region8: #{linear_forward.2} parent=1 // pred_region
      %27 = vsyncadd [#allocation10], 0
      %s29 = sshll.u32 %s0, 4
      %s30 = int_to_ptr.vmem [resolvable:$true] %s29
      %32 = dma.vmem_to_smem %s30, 16, [#allocation11], [#allocation10]
    $region9: #{linear_forward.2} parent=1 // pred_fallthru
      _
    // Predicated region
    $region10: #{linear_forward.2} parent=1 // pred_check
      _
    $region11: #{linear_forward.2} parent=1 // pred_check_branch
      %34 = sbr.rel (0) target = $region13
    $region12: #{linear_forward.2} parent=1 // pred_region
      _
    $region13: #{linear_forward.2} parent=1 // pred_fallthru
      _
    // Predicated region
    $region14: #{linear_forward.2} parent=1 // pred_check
      _
    $region15: #{linear_forward.2} parent=1 // pred_check_branch
      %36 = sbr.rel (0) target = $region17
    $region16: #{linear_forward.2} parent=1 // pred_region
      %38 = dma.done [#allocation9], 64
    $region17: #{linear_forward.2} parent=1 // pred_fallthru
      _
    // Predicated region
    $region18: #{linear_forward.2} parent=1 // pred_check
      _
    $region19: #{linear_forward.2} parent=1 // pred_check_branch
      %40 = sbr.rel (0) target = $region21
    $region20: #{linear_forward.2} parent=1 // pred_region
      %42 = dma.done [#allocation10], 16
    $region21: #{linear_forward.2} parent=1 // pred_fallthru
      _
    %43 = sfence
    %v44 = vld [vmem:[#allocation8] sm:$0x7]
    %v45 = vlaneseq
    %v46 = vshrl.u32 %v45, 7
    %vm48 = vcmp.lt.s32.totalorder %v46, 3
    %v49 = vsel %vm48, %v44, %v9
    %v50 = vlaneseq
    %v51 = vand.u32 %v50, 127
    %vm53 = vcmp.lt.s32.totalorder %v51, 8
    %v54 = vsel %vm53, %v49, %v9
    %s56 = ssub.s32 16, 1
    %57 = vst [vmem:[#allocation12] sm:%s56] %v54
    %v58 = vld [vmem:[#allocation12] sm:$0x1]
    %s59 = sld [smem:[#allocation11]]
    %v60 = vstv %s59
    %v61 = vmul.f32 %v58, %v60
    %v62 = vld [vmem:[#allocation12 + $0x1] sm:$0x1]
    %s63 = sld [smem:[#allocation11 + $0x1]]
    %v64 = vstv %s63
    %v65 = vmul.f32 %v62, %v64
    %v66 = vadd.f32 %v61, %v65
    %v67 = vld [vmem:[#allocation12 + $0x2] sm:$0x1]
    %s68 = sld [smem:[#allocation11 + $0x2]]
    %v69 = vstv %s68
    %v70 = vmul.f32 %v67, %v69
    %v71 = vadd.f32 %v66, %v70
    %s72 = sld [smem:[#allocation7]]
    %v73 = vstv %s72
    %v74 = vadd.f32 %v71, %v73
    %75 = vst [vmem:[%s4] sm:$0x1] %v74
    // Predicated region
    $region22: #{linear_forward.2} parent=1 // pred_check
      _
    $region23: #{linear_forward.2} parent=1 // pred_check_branch
      %77 = sbr.rel (0) target = $region25
    $region24: #{linear_forward.2} parent=1 // pred_region
      _
    $region25: #{linear_forward.2} parent=1 // pred_fallthru
      _
    // Predicated region
    $region26: #{linear_forward.2} parent=1 // pred_check
      _
    $region27: #{linear_forward.2} parent=1 // pred_check_branch
      %79 = sbr.rel (0) target = $region29
    $region28: #{linear_forward.2} parent=1 // pred_region
      _
    $region29: #{linear_forward.2} parent=1 // pred_fallthru
      _
    %80 = vsyncpa [#allocation9], 1
    %81 = vsyncpa [#allocation10], 1

</llo_original>
